<compile_context>
chip_gen: v6e
topology: v6e:2x2x1
jax: 0.10.0
libtpu: 0.0.40
codegen_flags: <defaults>
</compile_context>

<pallas_src>
import functools

import jax
import jax.numpy as jnp
from jax.experimental import pallas as pl
from jax.experimental.pallas import tpu as pltpu


# ----------------------------------------------------------------------------
# Fused forward kernel: whole GPULoadModel.forward for one batch tile.
#   x_ref : (tm, S)        activation tile
#   w_ref : (L, S, S)      stacked network weights (in, out), VMEM-resident
#   b_ref : (L, S)         stacked network biases,            VMEM-resident
#   wf_ref: (S, S)         final weight,                      VMEM-resident
#   bf_ref: (1, S)         final bias,                        VMEM-resident
#   o_ref : (tm, S)        output tile
# ----------------------------------------------------------------------------
def _fused_forward_kernel(x_ref, w_ref, b_ref, wf_ref, bf_ref, o_ref,
                          *, num_layers, num_outer, size):
    inv_s = 1.0 / float(size)
    act = x_ref[...].astype(jnp.float32)

    for _ in range(num_outer):                      # 3 outer iterations (unrolled)
        for l in range(num_layers):                 # Linear -> ReLU -> Dropout(id)
            y = jnp.dot(act, w_ref[l], preferred_element_type=jnp.float32)
            y = y + b_ref[l : l + 1, :]             # (1, S) broadcast
            act = jnp.maximum(y, 0.0)
            # TODO(synk): Dropout(0.1) treated as identity (eval mode).
        # outer-product mean == x * mean(x, -1, keepdims=True)
        m = jnp.sum(act, axis=-1, keepdims=True) * inv_s
        act = act * m

    out = jnp.dot(act, wf_ref[...], preferred_element_type=jnp.float32)
    out = out + bf_ref[...]
    o_ref[...] = out.astype(o_ref.dtype)


# ----------------------------------------------------------------------------
# Wrapper: single pallas_call, weights resident in VMEM, grid over batch rows.
# ----------------------------------------------------------------------------
def gpu_load_model_forward(x, params, *, tm=None, num_outer=3):
    w_stack, b_stack = params["network"]            # (L, S, S), (L, S)
    wf, bf = params["final"]                        # (S, S), (S,)
    M, S = x.shape
    L = w_stack.shape[0]
    assert w_stack.shape == (L, S, S) and b_stack.shape == (L, S)
    assert wf.shape == (S, S) and bf.shape == (S,)

    # Fused design keeps all weights VMEM-resident; check they comfortably fit
    # (v7x has 64 MiB physical VMEM, default scoped limit ~32 MiB).
    weight_bytes = 4 * ((L + 1) * S * S + (L + 1) * S)
    assert weight_bytes < 24 * (1 << 20), "weights too large for fused VMEM-resident kernel"

    # Batch tile: full batch when small (satisfies the (8,128) rule via
    # "equals full dim"), otherwise 256-row tiles (multiple of 8).
    if tm is None:
        tm = M if M <= 256 else 256
    grid_m = pl.cdiv(M, tm)

    bf2 = bf.reshape(1, S)

    n_matmuls = num_outer * L + 1
    cost = pl.CostEstimate(
        flops=2 * M * S * S * n_matmuls + num_outer * 2 * M * S,
        transcendentals=0,
        bytes_accessed=4 * (x.size + w_stack.size + b_stack.size
                            + wf.size + bf.size + M * S),
    )

    kernel = functools.partial(
        _fused_forward_kernel, num_layers=L, num_outer=num_outer, size=S)

    return pl.pallas_call(
        kernel,
        out_shape=jax.ShapeDtypeStruct((M, S), x.dtype),
        grid_spec=pltpu.PrefetchScalarGridSpec(
            num_scalar_prefetch=0,
            grid=(grid_m,),
            in_specs=[
                pl.BlockSpec((tm, S), lambda i: (i, 0)),       # activation tile
                pl.BlockSpec((L, S, S), lambda i: (0, 0, 0)),  # weights: resident
                pl.BlockSpec((L, S), lambda i: (0, 0)),        # biases:  resident
                pl.BlockSpec((S, S), lambda i: (0, 0)),        # final W: resident
                pl.BlockSpec((1, S), lambda i: (0, 0)),        # final b: resident
            ],
            out_specs=pl.BlockSpec((tm, S), lambda i: (i, 0)),
        ),
        compiler_params=pltpu.CompilerParams(
            dimension_semantics=("parallel",),                 # batch axis -> both TCs
        ),
        cost_estimate=cost,
    )(x, w_stack, b_stack, wf, bf2)


# ----------------------------------------------------------------------------
# Deterministic init. Weights stored as (in, out) = W_pytorch.T, stacked.
# ----------------------------------------------------------------------------
def init_params(key, size, num_layers):
    bound = 1.0 / jnp.sqrt(size)
    keys = jax.random.split(key, 2 * (num_layers + 1))
    ws, bs = [], []
    for i in range(num_layers):
        ws.append(jax.random.uniform(keys[2 * i], (size, size),
                                     jnp.float32, -bound, bound))
        bs.append(jax.random.uniform(keys[2 * i + 1], (size,),
                                     jnp.float32, -bound, bound))
    w_stack = jnp.stack(ws)                    # (L, size, size)
    b_stack = jnp.stack(bs)                    # (L, size)
    wf = jax.random.uniform(keys[-2], (size, size), jnp.float32, -bound, bound)
    bf = jax.random.uniform(keys[-1], (size,), jnp.float32, -bound, bound)
    return {"network": (w_stack, b_stack), "final": (wf, bf)}


# ----------------------------------------------------------------------------
# Pure-JAX reference (true outer-product + mean) for a correctness check.
# ----------------------------------------------------------------------------
def reference_forward(x, params):
    w_stack, b_stack = params["network"]
    wf, bf = params["final"]
    for _ in range(3):
        for l in range(w_stack.shape[0]):
            x = jnp.maximum(x @ w_stack[l] + b_stack[l], 0.0)
        outer = x[..., :, None] * x[..., None, :]
        x = jnp.mean(outer, axis=-1)
    return x @ wf + bf


if __name__ == "__main__":
    BATCH = 8
    SIZE = 128
    NUM_LAYERS = 3

    key = jax.random.PRNGKey(0)
    kx, kp = jax.random.split(key)
    x = jax.random.normal(kx, (BATCH, SIZE), jnp.float32)
    params = init_params(kp, SIZE, NUM_LAYERS)

    out = jax.block_until_ready(gpu_load_model_forward(x, params))
    ref = jax.block_until_ready(reference_forward(x, params))

    assert out.shape == (BATCH, SIZE)
    assert jnp.allclose(out, ref, atol=1e-4, rtol=1e-4), "mismatch vs reference"
    print("KERNEL_OK")
</pallas_src>

<mosaic_0001>
module attributes {stable_mosaic.version = 11 : i64} {
  func.func @_fused_forward_kernel(%arg0: i32, %arg1: memref<8x128xf32, #tpu.memory_space<vmem>>, %arg2: memref<3x128x128xf32, #tpu.memory_space<vmem>>, %arg3: memref<3x128xf32, #tpu.memory_space<vmem>>, %arg4: memref<128x128xf32, #tpu.memory_space<vmem>>, %arg5: memref<1x128xf32, #tpu.memory_space<vmem>>, %arg6: memref<8x128xf32, #tpu.memory_space<vmem>>) attributes {dimension_semantics = [#tpu.dimension_semantics<parallel>], iteration_bounds = array<i64: 1>, scalar_prefetch = 0 : i64, scratch_operands = 0 : i64, tpu.core_type = #tpu.core_type<tc>, window_params = [{transform_indices = @transform_0, window_bounds = array<i64: 8, 128>}, {pipeline_mode = #tpu.pipeline_mode<synchronous>, transform_indices = @transform_1, window_bounds = array<i64: 3, 128, 128>}, {pipeline_mode = #tpu.pipeline_mode<synchronous>, transform_indices = @transform_2, window_bounds = array<i64: 3, 128>}, {pipeline_mode = #tpu.pipeline_mode<synchronous>, transform_indices = @transform_3, window_bounds = array<i64: 128, 128>}, {pipeline_mode = #tpu.pipeline_mode<synchronous>, transform_indices = @transform_4, window_bounds = array<i64: 1, 128>}, {transform_indices = @transform_5, window_bounds = array<i64: 8, 128>}]} {
    %c0 = arith.constant 0 : index
    %c0_0 = arith.constant 0 : index
    %0 = vector.load %arg1[%c0, %c0_0] : memref<8x128xf32, #tpu.memory_space<vmem>>, vector<8x128xf32>
    %c0_1 = arith.constant 0 : index
    %c0_2 = arith.constant 0 : index
    %c0_3 = arith.constant 0 : index
    %1 = vector.load %arg2[%c0_1, %c0_2, %c0_3] : memref<3x128x128xf32, #tpu.memory_space<vmem>>, vector<1x128x128xf32>
    %2 = vector.shape_cast %1 : vector<1x128x128xf32> to vector<128x128xf32>
    %cst = arith.constant dense<0.000000e+00> : vector<8x128xf32>
    %3 = tpu.matmul %0, %2, %cst {dimension_numbers = #tpu.dot_dimension_numbers<[1], [0], [0], [1], [0, 0, 1, 1], [], []>} : vector<8x128xf32>, vector<128x128xf32>, vector<8x128xf32> -> vector<8x128xf32>
    %c0_4 = arith.constant 0 : index
    %c0_5 = arith.constant 0 : index
    %4 = vector.load %arg3[%c0_4, %c0_5] : memref<3x128xf32, #tpu.memory_space<vmem>>, vector<1x128xf32>
    %5 = vector.broadcast %4 : vector<1x128xf32> to vector<8x128xf32>
    %6 = arith.addf %3, %5 : vector<8x128xf32>
    %cst_6 = arith.constant 0.000000e+00 : f32
    %7 = vector.broadcast %cst_6 : f32 to vector<8x128xf32>
    %8 = arith.maximumf %6, %7 : vector<8x128xf32>
    %c1 = arith.constant 1 : index
    %c0_7 = arith.constant 0 : index
    %c0_8 = arith.constant 0 : index
    %9 = vector.load %arg2[%c1, %c0_7, %c0_8] : memref<3x128x128xf32, #tpu.memory_space<vmem>>, vector<1x128x128xf32>
    %10 = vector.shape_cast %9 : vector<1x128x128xf32> to vector<128x128xf32>
    %cst_9 = arith.constant dense<0.000000e+00> : vector<8x128xf32>
    %11 = tpu.matmul %8, %10, %cst_9 {dimension_numbers = #tpu.dot_dimension_numbers<[1], [0], [0], [1], [0, 0, 1, 1], [], []>} : vector<8x128xf32>, vector<128x128xf32>, vector<8x128xf32> -> vector<8x128xf32>
    %c1_10 = arith.constant 1 : index
    %c0_11 = arith.constant 0 : index
    %12 = vector.load %arg3[%c1_10, %c0_11] : memref<3x128xf32, #tpu.memory_space<vmem>>, vector<1x128xf32>
    %13 = vector.broadcast %12 : vector<1x128xf32> to vector<8x128xf32>
    %14 = arith.addf %11, %13 : vector<8x128xf32>
    %cst_12 = arith.constant 0.000000e+00 : f32
    %15 = vector.broadcast %cst_12 : f32 to vector<8x128xf32>
    %16 = arith.maximumf %14, %15 : vector<8x128xf32>
    %c2 = arith.constant 2 : index
    %c0_13 = arith.constant 0 : index
    %c0_14 = arith.constant 0 : index
    %17 = vector.load %arg2[%c2, %c0_13, %c0_14] : memref<3x128x128xf32, #tpu.memory_space<vmem>>, vector<1x128x128xf32>
    %18 = vector.shape_cast %17 : vector<1x128x128xf32> to vector<128x128xf32>
    %cst_15 = arith.constant dense<0.000000e+00> : vector<8x128xf32>
    %19 = tpu.matmul %16, %18, %cst_15 {dimension_numbers = #tpu.dot_dimension_numbers<[1], [0], [0], [1], [0, 0, 1, 1], [], []>} : vector<8x128xf32>, vector<128x128xf32>, vector<8x128xf32> -> vector<8x128xf32>
    %c2_16 = arith.constant 2 : index
    %c0_17 = arith.constant 0 : index
    %20 = vector.load %arg3[%c2_16, %c0_17] : memref<3x128xf32, #tpu.memory_space<vmem>>, vector<1x128xf32>
    %21 = vector.broadcast %20 : vector<1x128xf32> to vector<8x128xf32>
    %22 = arith.addf %19, %21 : vector<8x128xf32>
    %cst_18 = arith.constant 0.000000e+00 : f32
    %23 = vector.broadcast %cst_18 : f32 to vector<8x128xf32>
    %24 = arith.maximumf %22, %23 : vector<8x128xf32>
    %cst_19 = arith.constant dense<0.000000e+00> : vector<8xf32>
    %25 = vector.multi_reduction <add>, %24, %cst_19 [1] : vector<8x128xf32> to vector<8xf32>
    %26 = vector.shape_cast %25 : vector<8xf32> to vector<8x1xf32>
    %cst_20 = arith.constant 7.812500e-03 : f32
    %27 = vector.broadcast %cst_20 : f32 to vector<8x1xf32>
    %28 = arith.mulf %26, %27 : vector<8x1xf32>
    %29 = vector.broadcast %28 : vector<8x1xf32> to vector<8x128xf32>
    %30 = arith.mulf %24, %29 : vector<8x128xf32>
    %c0_21 = arith.constant 0 : index
    %c0_22 = arith.constant 0 : index
    %c0_23 = arith.constant 0 : index
    %31 = vector.load %arg2[%c0_21, %c0_22, %c0_23] : memref<3x128x128xf32, #tpu.memory_space<vmem>>, vector<1x128x128xf32>
    %32 = vector.shape_cast %31 : vector<1x128x128xf32> to vector<128x128xf32>
    %cst_24 = arith.constant dense<0.000000e+00> : vector<8x128xf32>
    %33 = tpu.matmul %30, %32, %cst_24 {dimension_numbers = #tpu.dot_dimension_numbers<[1], [0], [0], [1], [0, 0, 1, 1], [], []>} : vector<8x128xf32>, vector<128x128xf32>, vector<8x128xf32> -> vector<8x128xf32>
    %c0_25 = arith.constant 0 : index
    %c0_26 = arith.constant 0 : index
    %34 = vector.load %arg3[%c0_25, %c0_26] : memref<3x128xf32, #tpu.memory_space<vmem>>, vector<1x128xf32>
    %35 = vector.broadcast %34 : vector<1x128xf32> to vector<8x128xf32>
    %36 = arith.addf %33, %35 : vector<8x128xf32>
    %cst_27 = arith.constant 0.000000e+00 : f32
    %37 = vector.broadcast %cst_27 : f32 to vector<8x128xf32>
    %38 = arith.maximumf %36, %37 : vector<8x128xf32>
    %c1_28 = arith.constant 1 : index
    %c0_29 = arith.constant 0 : index
    %c0_30 = arith.constant 0 : index
    %39 = vector.load %arg2[%c1_28, %c0_29, %c0_30] : memref<3x128x128xf32, #tpu.memory_space<vmem>>, vector<1x128x128xf32>
    %40 = vector.shape_cast %39 : vector<1x128x128xf32> to vector<128x128xf32>
    %cst_31 = arith.constant dense<0.000000e+00> : vector<8x128xf32>
    %41 = tpu.matmul %38, %40, %cst_31 {dimension_numbers = #tpu.dot_dimension_numbers<[1], [0], [0], [1], [0, 0, 1, 1], [], []>} : vector<8x128xf32>, vector<128x128xf32>, vector<8x128xf32> -> vector<8x128xf32>
    %c1_32 = arith.constant 1 : index
    %c0_33 = arith.constant 0 : index
    %42 = vector.load %arg3[%c1_32, %c0_33] : memref<3x128xf32, #tpu.memory_space<vmem>>, vector<1x128xf32>
    %43 = vector.broadcast %42 : vector<1x128xf32> to vector<8x128xf32>
    %44 = arith.addf %41, %43 : vector<8x128xf32>
    %cst_34 = arith.constant 0.000000e+00 : f32
    %45 = vector.broadcast %cst_34 : f32 to vector<8x128xf32>
    %46 = arith.maximumf %44, %45 : vector<8x128xf32>
    %c2_35 = arith.constant 2 : index
    %c0_36 = arith.constant 0 : index
    %c0_37 = arith.constant 0 : index
    %47 = vector.load %arg2[%c2_35, %c0_36, %c0_37] : memref<3x128x128xf32, #tpu.memory_space<vmem>>, vector<1x128x128xf32>
    %48 = vector.shape_cast %47 : vector<1x128x128xf32> to vector<128x128xf32>
    %cst_38 = arith.constant dense<0.000000e+00> : vector<8x128xf32>
    %49 = tpu.matmul %46, %48, %cst_38 {dimension_numbers = #tpu.dot_dimension_numbers<[1], [0], [0], [1], [0, 0, 1, 1], [], []>} : vector<8x128xf32>, vector<128x128xf32>, vector<8x128xf32> -> vector<8x128xf32>
    %c2_39 = arith.constant 2 : index
    %c0_40 = arith.constant 0 : index
    %50 = vector.load %arg3[%c2_39, %c0_40] : memref<3x128xf32, #tpu.memory_space<vmem>>, vector<1x128xf32>
    %51 = vector.broadcast %50 : vector<1x128xf32> to vector<8x128xf32>
    %52 = arith.addf %49, %51 : vector<8x128xf32>
    %cst_41 = arith.constant 0.000000e+00 : f32
    %53 = vector.broadcast %cst_41 : f32 to vector<8x128xf32>
    %54 = arith.maximumf %52, %53 : vector<8x128xf32>
    %cst_42 = arith.constant dense<0.000000e+00> : vector<8xf32>
    %55 = vector.multi_reduction <add>, %54, %cst_42 [1] : vector<8x128xf32> to vector<8xf32>
    %56 = vector.shape_cast %55 : vector<8xf32> to vector<8x1xf32>
    %cst_43 = arith.constant 7.812500e-03 : f32
    %57 = vector.broadcast %cst_43 : f32 to vector<8x1xf32>
    %58 = arith.mulf %56, %57 : vector<8x1xf32>
    %59 = vector.broadcast %58 : vector<8x1xf32> to vector<8x128xf32>
    %60 = arith.mulf %54, %59 : vector<8x128xf32>
    %c0_44 = arith.constant 0 : index
    %c0_45 = arith.constant 0 : index
    %c0_46 = arith.constant 0 : index
    %61 = vector.load %arg2[%c0_44, %c0_45, %c0_46] : memref<3x128x128xf32, #tpu.memory_space<vmem>>, vector<1x128x128xf32>
    %62 = vector.shape_cast %61 : vector<1x128x128xf32> to vector<128x128xf32>
    %cst_47 = arith.constant dense<0.000000e+00> : vector<8x128xf32>
    %63 = tpu.matmul %60, %62, %cst_47 {dimension_numbers = #tpu.dot_dimension_numbers<[1], [0], [0], [1], [0, 0, 1, 1], [], []>} : vector<8x128xf32>, vector<128x128xf32>, vector<8x128xf32> -> vector<8x128xf32>
    %c0_48 = arith.constant 0 : index
    %c0_49 = arith.constant 0 : index
    %64 = vector.load %arg3[%c0_48, %c0_49] : memref<3x128xf32, #tpu.memory_space<vmem>>, vector<1x128xf32>
    %65 = vector.broadcast %64 : vector<1x128xf32> to vector<8x128xf32>
    %66 = arith.addf %63, %65 : vector<8x128xf32>
    %cst_50 = arith.constant 0.000000e+00 : f32
    %67 = vector.broadcast %cst_50 : f32 to vector<8x128xf32>
    %68 = arith.maximumf %66, %67 : vector<8x128xf32>
    %c1_51 = arith.constant 1 : index
    %c0_52 = arith.constant 0 : index
    %c0_53 = arith.constant 0 : index
    %69 = vector.load %arg2[%c1_51, %c0_52, %c0_53] : memref<3x128x128xf32, #tpu.memory_space<vmem>>, vector<1x128x128xf32>
    %70 = vector.shape_cast %69 : vector<1x128x128xf32> to vector<128x128xf32>
    %cst_54 = arith.constant dense<0.000000e+00> : vector<8x128xf32>
    %71 = tpu.matmul %68, %70, %cst_54 {dimension_numbers = #tpu.dot_dimension_numbers<[1], [0], [0], [1], [0, 0, 1, 1], [], []>} : vector<8x128xf32>, vector<128x128xf32>, vector<8x128xf32> -> vector<8x128xf32>
    %c1_55 = arith.constant 1 : index
    %c0_56 = arith.constant 0 : index
    %72 = vector.load %arg3[%c1_55, %c0_56] : memref<3x128xf32, #tpu.memory_space<vmem>>, vector<1x128xf32>
    %73 = vector.broadcast %72 : vector<1x128xf32> to vector<8x128xf32>
    %74 = arith.addf %71, %73 : vector<8x128xf32>
    %cst_57 = arith.constant 0.000000e+00 : f32
    %75 = vector.broadcast %cst_57 : f32 to vector<8x128xf32>
    %76 = arith.maximumf %74, %75 : vector<8x128xf32>
    %c2_58 = arith.constant 2 : index
    %c0_59 = arith.constant 0 : index
    %c0_60 = arith.constant 0 : index
    %77 = vector.load %arg2[%c2_58, %c0_59, %c0_60] : memref<3x128x128xf32, #tpu.memory_space<vmem>>, vector<1x128x128xf32>
    %78 = vector.shape_cast %77 : vector<1x128x128xf32> to vector<128x128xf32>
    %cst_61 = arith.constant dense<0.000000e+00> : vector<8x128xf32>
    %79 = tpu.matmul %76, %78, %cst_61 {dimension_numbers = #tpu.dot_dimension_numbers<[1], [0], [0], [1], [0, 0, 1, 1], [], []>} : vector<8x128xf32>, vector<128x128xf32>, vector<8x128xf32> -> vector<8x128xf32>
    %c2_62 = arith.constant 2 : index
    %c0_63 = arith.constant 0 : index
    %80 = vector.load %arg3[%c2_62, %c0_63] : memref<3x128xf32, #tpu.memory_space<vmem>>, vector<1x128xf32>
    %81 = vector.broadcast %80 : vector<1x128xf32> to vector<8x128xf32>
    %82 = arith.addf %79, %81 : vector<8x128xf32>
    %cst_64 = arith.constant 0.000000e+00 : f32
    %83 = vector.broadcast %cst_64 : f32 to vector<8x128xf32>
    %84 = arith.maximumf %82, %83 : vector<8x128xf32>
    %cst_65 = arith.constant dense<0.000000e+00> : vector<8xf32>
    %85 = vector.multi_reduction <add>, %84, %cst_65 [1] : vector<8x128xf32> to vector<8xf32>
    %86 = vector.shape_cast %85 : vector<8xf32> to vector<8x1xf32>
    %cst_66 = arith.constant 7.812500e-03 : f32
    %87 = vector.broadcast %cst_66 : f32 to vector<8x1xf32>
    %88 = arith.mulf %86, %87 : vector<8x1xf32>
    %89 = vector.broadcast %88 : vector<8x1xf32> to vector<8x128xf32>
    %90 = arith.mulf %84, %89 : vector<8x128xf32>
    %c0_67 = arith.constant 0 : index
    %c0_68 = arith.constant 0 : index
    %91 = vector.load %arg4[%c0_67, %c0_68] : memref<128x128xf32, #tpu.memory_space<vmem>>, vector<128x128xf32>
    %cst_69 = arith.constant dense<0.000000e+00> : vector<8x128xf32>
    %92 = tpu.matmul %90, %91, %cst_69 {dimension_numbers = #tpu.dot_dimension_numbers<[1], [0], [0], [1], [0, 0, 1, 1], [], []>} : vector<8x128xf32>, vector<128x128xf32>, vector<8x128xf32> -> vector<8x128xf32>
    %c0_70 = arith.constant 0 : index
    %c0_71 = arith.constant 0 : index
    %93 = vector.load %arg5[%c0_70, %c0_71] : memref<1x128xf32, #tpu.memory_space<vmem>>, vector<1x128xf32>
    %94 = vector.broadcast %93 : vector<1x128xf32> to vector<8x128xf32>
    %95 = arith.addf %92, %94 : vector<8x128xf32>
    %c0_72 = arith.constant 0 : index
    %c0_73 = arith.constant 0 : index
    %96 = vector.load %arg6[%c0_72, %c0_73] : memref<8x128xf32, #tpu.memory_space<vmem>>, vector<8x128xf32>
    tpu.vector_store %arg6[%c0_72, %c0_73], %95 {strides = array<i32>} : memref<8x128xf32, #tpu.memory_space<vmem>>, vector<8x128xf32>,
    return
  }
  func.func @transform_0(%arg0: i32) -> (i32, i32) {
    %c0_i32 = arith.constant 0 : i32
    %c0_i32_0 = arith.constant 0 : i32
    return %arg0, %c0_i32 : i32, i32
  }
  func.func @transform_1(%arg0: i32) -> (i32, i32, i32) {
    %c0_i32 = arith.constant 0 : i32
    %c0_i32_0 = arith.constant 0 : i32
    %c0_i32_1 = arith.constant 0 : i32
    %c0_i32_2 = arith.constant 0 : i32
    return %c0_i32, %c0_i32_0, %c0_i32_1 : i32, i32, i32
  }
  func.func @transform_2(%arg0: i32) -> (i32, i32) {
    %c0_i32 = arith.constant 0 : i32
    %c0_i32_0 = arith.constant 0 : i32
    %c0_i32_1 = arith.constant 0 : i32
    return %c0_i32, %c0_i32_0 : i32, i32
  }
  func.func @transform_3(%arg0: i32) -> (i32, i32) {
    %c0_i32 = arith.constant 0 : i32
    %c0_i32_0 = arith.constant 0 : i32
    %c0_i32_1 = arith.constant 0 : i32
    return %c0_i32, %c0_i32_0 : i32, i32
  }
  func.func @transform_4(%arg0: i32) -> (i32, i32) {
    %c0_i32 = arith.constant 0 : i32
    %c0_i32_0 = arith.constant 0 : i32
    %c0_i32_1 = arith.constant 0 : i32
    return %c0_i32, %c0_i32_0 : i32, i32
  }
  func.func @transform_5(%arg0: i32) -> (i32, i32) {
    %c0_i32 = arith.constant 0 : i32
    %c0_i32_0 = arith.constant 0 : i32
    return %arg0, %c0_i32 : i32, i32
  }
}

</mosaic_0001>

<llo_original>
// kernel: tpu_custom_call.1
$region0: #{tpu_custom_call.1}
  #allocation0 [shape = 'u32[]', space=smem, size = 0x4, offset = 0x4, fixed_abs, tag = 'smem constant byte address 0x4 - core index']
  #allocation1 [shape = 'u32[144,128]{1,0:T(1,128)}', space=vmem, size = 0x12000, scoped, tag = 'internal scratch']
  %s0 = inlined_call_operand.hbm [shape: f32[8,128], index: 0, kind: input, shape index: {}]
  %s1 = inlined_call_operand.hbm [shape: f32[3,128,128], index: 1, kind: input, shape index: {}]
  %s2 = inlined_call_operand.hbm [shape: f32[3,128], index: 2, kind: input, shape index: {}]
  %s3 = inlined_call_operand.hbm [shape: f32[128,128], index: 3, kind: input, shape index: {}]
  %s4 = inlined_call_operand.vmem [shape: f32[1,128], index: 4, kind: input, shape index: {}]
  %s5 = inlined_call_operand.hbm [shape: f32[8,128], index: 5, kind: output, shape index: {}]
  %s6 = sld [smem:[#allocation0]]
  $region46: #{tpu_custom_call.1} parent=0
    _
  %s8 = ssub.s32 1, %s6
  %s9 = scalar_select 0, %s8, %s6
  $region1: #{tpu_custom_call.1} parent=0
    #allocation2 [shape = 'u8[4096]{0}', space=vmem, size = 0x1000, scoped, tag = 'input window, operand 0, single buffered']
    #allocation3 [shape = 's32[1]{0}', space=sflag, size = 0x4, scoped, tag = 'scoped memory for tpu_custom_call.1']
    #allocation4 [shape = 's32[1]{0}', space=sflag, size = 0x4, scoped, tag = 'scoped memory for tpu_custom_call.1']
    #allocation5 [shape = 'u8[196608]{0}', space=vmem, size = 0x30000, scoped, tag = 'input window, operand 1, single buffered']
    #allocation6 [shape = 's32[1]{0}', space=sflag, size = 0x4, scoped, tag = 'scoped memory for tpu_custom_call.1']
    #allocation7 [shape = 'u8[2048]{0}', space=vmem, size = 0x800, scoped, tag = 'input window, operand 2, single buffered']
    #allocation8 [shape = 'u8[65536]{0}', space=vmem, size = 0x10000, scoped, tag = 'input window, operand 3, single buffered']
    #allocation9 [shape = 's32[1]{0}', space=sflag, size = 0x4, scoped, tag = 'scoped memory for tpu_custom_call.1']
    #allocation10 [shape = 'u8[4096]{0}', space=vmem, size = 0x1000, scoped, tag = 'output window, operand 0, single buffered']
    %10 = vsyncpa [#allocation3], 0
    %11 = vsyncpa [#allocation6], 0
    %12 = vsyncpa [#allocation9], 0
    %13 = vsyncpa [#allocation4], 0
    // Predicated region
    $region2: #{tpu_custom_call.1} parent=1 // pred_check
      _
    $region3: #{tpu_custom_call.1} parent=1 // pred_check_branch
      %15 = sbr.rel (0) target = $region5
    $region4: #{tpu_custom_call.1} parent=1 // pred_region
      %s17 = ssub.s32 128, 128
      %18 = vsyncadd [#allocation3], %s17
      %s20 = sshll.u32 [#allocation2], 4
      %s21 = int_to_ptr.vmem [resolvable:$true] %s20
      %23 = dma.hbm_to_vmem [thread:$0]  %s0, 128, %s21, [#allocation3]
    $region5: #{tpu_custom_call.1} parent=1 // pred_fallthru
      _
    // Predicated region
    $region6: #{tpu_custom_call.1} parent=1 // pred_check
      _
    $region7: #{tpu_custom_call.1} parent=1 // pred_check_branch
      %25 = sbr.rel (0) target = $region9
    $region8: #{tpu_custom_call.1} parent=1 // pred_region
      %s27 = ssub.s32 6144, 6144
      %28 = vsyncadd [#allocation6], %s27
      %s29 = sshll.u32 [#allocation5], 4
      %s30 = int_to_ptr.vmem [resolvable:$true] %s29
      %35 = dma.hbm_to_vmem [thread:$0]  %s1, 6144, %s30, [#allocation6], 128, 128, 8
    $region9: #{tpu_custom_call.1} parent=1 // pred_fallthru
      _
    // Predicated region
    $region10: #{tpu_custom_call.1} parent=1 // pred_check
      _
    $region11: #{tpu_custom_call.1} parent=1 // pred_check_branch
      %37 = sbr.rel (0) target = $region13
    $region12: #{tpu_custom_call.1} parent=1 // pred_region
      %s39 = ssub.s32 64, 64
      %40 = vsyncadd [#allocation6], %s39
      %s42 = sshll.u32 [#allocation7], 4
      %s43 = int_to_ptr.vmem [resolvable:$true] %s42
      %45 = dma.hbm_to_vmem [thread:$0]  %s2, 64, %s43, [#allocation6]
    $region13: #{tpu_custom_call.1} parent=1 // pred_fallthru
      _
    // Predicated region
    $region14: #{tpu_custom_call.1} parent=1 // pred_check
      _
    $region15: #{tpu_custom_call.1} parent=1 // pred_check_branch
      %47 = sbr.rel (0) target = $region17
    $region16: #{tpu_custom_call.1} parent=1 // pred_region
      %s49 = ssub.s32 2048, 2048
      %50 = vsyncadd [#allocation9], %s49
      %s51 = sshll.u32 [#allocation8], 4
      %s52 = int_to_ptr.vmem [resolvable:$true] %s51
      %57 = dma.hbm_to_vmem [thread:$0]  %s3, 2048, %s52, [#allocation9], 128, 128, 8
    $region17: #{tpu_custom_call.1} parent=1 // pred_fallthru
      _
    // Predicated region
    $region18: #{tpu_custom_call.1} parent=1 // pred_check
      _
    $region19: #{tpu_custom_call.1} parent=1 // pred_check_branch
      %59 = sbr.rel (0) target = $region21
    $region20: #{tpu_custom_call.1} parent=1 // pred_region
      _
    $region21: #{tpu_custom_call.1} parent=1 // pred_fallthru
      _
    // Predicated region
    $region22: #{tpu_custom_call.1} parent=1 // pred_check
      _
    $region23: #{tpu_custom_call.1} parent=1 // pred_check_branch
      %61 = sbr.rel (0) target = $region25
    $region24: #{tpu_custom_call.1} parent=1 // pred_region
      %62 = dma.done [#allocation3], 128
    $region25: #{tpu_custom_call.1} parent=1 // pred_fallthru
      _
    // Predicated region
    $region26: #{tpu_custom_call.1} parent=1 // pred_check
      _
    $region27: #{tpu_custom_call.1} parent=1 // pred_check_branch
      %64 = sbr.rel (0) target = $region29
    $region28: #{tpu_custom_call.1} parent=1 // pred_region
      %65 = dma.done [#allocation6], 6144
    $region29: #{tpu_custom_call.1} parent=1 // pred_fallthru
      _
    // Predicated region
    $region30: #{tpu_custom_call.1} parent=1 // pred_check
      _
    $region31: #{tpu_custom_call.1} parent=1 // pred_check_branch
      %67 = sbr.rel (0) target = $region33
    $region32: #{tpu_custom_call.1} parent=1 // pred_region
      %68 = dma.done [#allocation6], 64
    $region33: #{tpu_custom_call.1} parent=1 // pred_fallthru
      _
    // Predicated region
    $region34: #{tpu_custom_call.1} parent=1 // pred_check
      _
    $region35: #{tpu_custom_call.1} parent=1 // pred_check_branch
      %70 = sbr.rel (0) target = $region37
    $region36: #{tpu_custom_call.1} parent=1 // pred_region
      %71 = dma.done [#allocation9], 2048
    $region37: #{tpu_custom_call.1} parent=1 // pred_fallthru
      _
    %v72 = vld [vmem:[#allocation2] sm:$0xff]
    %v73 = vld [vmem:[#allocation5] sm:$0xff]
    %v74 = vld [vmem:[#allocation5 + $0x8] sm:$0xff]
    %v75 = vld [vmem:[#allocation5 + $0x10] sm:$0xff]
    %v76 = vld [vmem:[#allocation5 + $0x18] sm:$0xff]
    %v77 = vld [vmem:[#allocation5 + $0x20] sm:$0xff]
    %v78 = vld [vmem:[#allocation5 + $0x28] sm:$0xff]
    %v79 = vld [vmem:[#allocation5 + $0x30] sm:$0xff]
    %v80 = vld [vmem:[#allocation5 + $0x38] sm:$0xff]
    %v81 = vld [vmem:[#allocation5 + $0x40] sm:$0xff]
    %v82 = vld [vmem:[#allocation5 + $0x48] sm:$0xff]
    %v83 = vld [vmem:[#allocation5 + $0x50] sm:$0xff]
    %v84 = vld [vmem:[#allocation5 + $0x58] sm:$0xff]
    %v85 = vld [vmem:[#allocation5 + $0x60] sm:$0xff]
    %v86 = vld [vmem:[#allocation5 + $0x68] sm:$0xff]
    %v87 = vld [vmem:[#allocation5 + $0x70] sm:$0xff]
    %v88 = vld [vmem:[#allocation5 + $0x78] sm:$0xff]
    %v89 = vld [vmem:[#allocation7] sm:$0x1]
    %v90 = vlaneseq
    %v91 = vshrl.u32 %v90, 7
    %v92 = vsub.s32 0, %v91
    %v93 = vrot.slane %v89, %v92
    %94 = vmatprep.subr.mxu0 0.0
    %95 = vmatpush1.msra.mxu0 %v88
    %96 = vmatprep.subr.mxu0 0.0
    %97 = vmatpush1.msra.mxu0 %v87
    %98 = vmatprep.subr.mxu0 0.0
    %99 = vmatpush1.msra.mxu0 %v86
    %100 = vmatprep.subr.mxu0 0.0
    %101 = vmatpush1.msra.mxu0 %v85
    %102 = vmatprep.subr.mxu0 0.0
    %103 = vmatpush1.msra.mxu0 %v84
    %104 = vmatprep.subr.mxu0 0.0
    %105 = vmatpush1.msra.mxu0 %v83
    %106 = vmatprep.subr.mxu0 0.0
    %107 = vmatpush1.msra.mxu0 %v82
    %108 = vmatprep.subr.mxu0 0.0
    %109 = vmatpush1.msra.mxu0 %v81
    %110 = vmatprep.subr.mxu0 0.0
    %111 = vmatpush1.msra.mxu0 %v80
    %112 = vmatprep.subr.mxu0 0.0
    %113 = vmatpush1.msra.mxu0 %v79
    %114 = vmatprep.subr.mxu0 0.0
    %115 = vmatpush1.msra.mxu0 %v78
    %116 = vmatprep.subr.mxu0 0.0
    %117 = vmatpush1.msra.mxu0 %v77
    %118 = vmatprep.subr.mxu0 0.0
    %119 = vmatpush1.msra.mxu0 %v76
    %120 = vmatprep.subr.mxu0 0.0
    %121 = vmatpush1.msra.mxu0 %v75
    %122 = vmatprep.subr.mxu0 0.0
    %123 = vmatpush1.msra.mxu0 %v74
    %124 = vmatprep.subr.mxu0 0.0
    %125 = vmatpush1.msra.mxu0 %v73
    %126 = vmatprep.subr.mxu0 0.0
    %127 = vmatpush2.msra.mxu0 0.0
    %128 = vmatprep.subr.mxu0 0.0
    %129 = vmatpush2.msra.mxu0 0.0
    %130 = vmatprep.subr.mxu0 0.0
    %131 = vmatpush2.msra.mxu0 0.0
    %132 = vmatprep.subr.mxu0 0.0
    %133 = vmatpush2.msra.mxu0 0.0
    %134 = vmatprep.subr.mxu0 0.0
    %135 = vmatpush2.msra.mxu0 0.0
    %136 = vmatprep.subr.mxu0 0.0
    %137 = vmatpush2.msra.mxu0 0.0
    %138 = vmatprep.subr.mxu0 0.0
    %139 = vmatpush2.msra.mxu0 0.0
    %140 = vmatprep.subr.mxu0 0.0
    %141 = vmatpush2.msra.mxu0 0.0
    %142 = vmatprep.subr.mxu0 0.0
    %143 = vmatpush2.msra.mxu0 0.0
    %144 = vmatprep.subr.mxu0 0.0
    %145 = vmatpush2.msra.mxu0 0.0
    %146 = vmatprep.subr.mxu0 0.0
    %147 = vmatpush2.msra.mxu0 0.0
    %148 = vmatprep.subr.mxu0 0.0
    %149 = vmatpush2.msra.mxu0 0.0
    %150 = vmatprep.subr.mxu0 0.0
    %151 = vmatpush2.msra.mxu0 0.0
    %152 = vmatprep.subr.mxu0 0.0
    %153 = vmatpush2.msra.mxu0 0.0
    %154 = vmatprep.subr.mxu0 0.0
    %155 = vmatpush2.msra.mxu0 0.0
    %156 = vmatprep.subr.mxu0 0.0
    %157 = vmatpush2.msra.mxu0 0.0
    %158 = vmatprep.mubr.f32.mxu0 0.0
    %159 = vmatmul.mubr.f32.gmra.mxu0 %v72
    %v160 = vpop.f32.mrf.mxu0
    %v161 = vadd.f32 %v93, %v160
    %v162 = vpop.f32.mrf.mxu0
    %163 = vdwg.mxu0
    %v164 = vmax.f32 %v161, 0.0
    %s165 = scalar_lea.vmem [#allocation5], 128
    %v166 = vld [vmem:[%s165] sm:$0xff]
    %v167 = vld [vmem:[%s165 + $0x8] sm:$0xff]
    %v168 = vld [vmem:[%s165 + $0x10] sm:$0xff]
    %v169 = vld [vmem:[%s165 + $0x18] sm:$0xff]
    %v170 = vld [vmem:[%s165 + $0x20] sm:$0xff]
    %v171 = vld [vmem:[%s165 + $0x28] sm:$0xff]
    %v172 = vld [vmem:[%s165 + $0x30] sm:$0xff]
    %v173 = vld [vmem:[%s165 + $0x38] sm:$0xff]
    %v174 = vld [vmem:[%s165 + $0x40] sm:$0xff]
    %v175 = vld [vmem:[%s165 + $0x48] sm:$0xff]
    %v176 = vld [vmem:[%s165 + $0x50] sm:$0xff]
    %v177 = vld [vmem:[%s165 + $0x58] sm:$0xff]
    %v178 = vld [vmem:[%s165 + $0x60] sm:$0xff]
    %v179 = vld [vmem:[%s165 + $0x68] sm:$0xff]
    %v180 = vld [vmem:[%s165 + $0x70] sm:$0xff]
    %v181 = vld [vmem:[%s165 + $0x78] sm:$0xff]
    %v182 = vld [vmem:[#allocation7 + $0x1] sm:$0x1]
    %v183 = vlaneseq
    %v184 = vshrl.u32 %v183, 7
    %v185 = vsub.s32 0, %v184
    %v186 = vrot.slane %v182, %v185
    %187 = vmatprep.subr.mxu0 0.0
    %188 = vmatpush1.msra.mxu0 %v181
    %189 = vmatprep.subr.mxu0 0.0
    %190 = vmatpush1.msra.mxu0 %v180
    %191 = vmatprep.subr.mxu0 0.0
    %192 = vmatpush1.msra.mxu0 %v179
    %193 = vmatprep.subr.mxu0 0.0
    %194 = vmatpush1.msra.mxu0 %v178
    %195 = vmatprep.subr.mxu0 0.0
    %196 = vmatpush1.msra.mxu0 %v177
    %197 = vmatprep.subr.mxu0 0.0
    %198 = vmatpush1.msra.mxu0 %v176
    %199 = vmatprep.subr.mxu0 0.0
    %200 = vmatpush1.msra.mxu0 %v175
    %201 = vmatprep.subr.mxu0 0.0
    %202 = vmatpush1.msra.mxu0 %v174
    %203 = vmatprep.subr.mxu0 0.0
    %204 = vmatpush1.msra.mxu0 %v173
    %205 = vmatprep.subr.mxu0 0.0
    %206 = vmatpush1.msra.mxu0 %v172
    %207 = vmatprep.subr.mxu0 0.0
    %208 = vmatpush1.msra.mxu0 %v171
    %209 = vmatprep.subr.mxu0 0.0
    %210 = vmatpush1.msra.mxu0 %v170
    %211 = vmatprep.subr.mxu0 0.0
    %212 = vmatpush1.msra.mxu0 %v169
    %213 = vmatprep.subr.mxu0 0.0
    %214 = vmatpush1.msra.mxu0 %v168
    %215 = vmatprep.subr.mxu0 0.0
    %216 = vmatpush1.msra.mxu0 %v167
    %217 = vmatprep.subr.mxu0 0.0
    %218 = vmatpush1.msra.mxu0 %v166
    %219 = vmatprep.subr.mxu0 0.0
    %220 = vmatpush2.msra.mxu0 0.0
    %221 = vmatprep.subr.mxu0 0.0
    %222 = vmatpush2.msra.mxu0 0.0
    %223 = vmatprep.subr.mxu0 0.0
    %224 = vmatpush2.msra.mxu0 0.0
    %225 = vmatprep.subr.mxu0 0.0
    %226 = vmatpush2.msra.mxu0 0.0
    %227 = vmatprep.subr.mxu0 0.0
    %228 = vmatpush2.msra.mxu0 0.0
    %229 = vmatprep.subr.mxu0 0.0
    %230 = vmatpush2.msra.mxu0 0.0
    %231 = vmatprep.subr.mxu0 0.0
    %232 = vmatpush2.msra.mxu0 0.0
    %233 = vmatprep.subr.mxu0 0.0
    %234 = vmatpush2.msra.mxu0 0.0
    %235 = vmatprep.subr.mxu0 0.0
    %236 = vmatpush2.msra.mxu0 0.0
    %237 = vmatprep.subr.mxu0 0.0
    %238 = vmatpush2.msra.mxu0 0.0
    %239 = vmatprep.subr.mxu0 0.0
    %240 = vmatpush2.msra.mxu0 0.0
    %241 = vmatprep.subr.mxu0 0.0
    %242 = vmatpush2.msra.mxu0 0.0
    %243 = vmatprep.subr.mxu0 0.0
    %244 = vmatpush2.msra.mxu0 0.0
    %245 = vmatprep.subr.mxu0 0.0
    %246 = vmatpush2.msra.mxu0 0.0
    %247 = vmatprep.subr.mxu0 0.0
    %248 = vmatpush2.msra.mxu0 0.0
    %249 = vmatprep.subr.mxu0 0.0
    %250 = vmatpush2.msra.mxu0 0.0
    %251 = vmatprep.mubr.f32.mxu0 0.0
    %252 = vmatmul.mubr.f32.gmra.mxu0 %v164
    %v253 = vpop.f32.mrf.mxu0
    %v254 = vadd.f32 %v186, %v253
    %v255 = vpop.f32.mrf.mxu0
    %256 = vdwg.mxu0
    %v257 = vmax.f32 %v254, 0.0
    %s258 = scalar_lea.vmem [#allocation5], 256
    %v259 = vld [vmem:[%s258] sm:$0xff]
    %v260 = vld [vmem:[%s258 + $0x8] sm:$0xff]
    %v261 = vld [vmem:[%s258 + $0x10] sm:$0xff]
    %v262 = vld [vmem:[%s258 + $0x18] sm:$0xff]
    %v263 = vld [vmem:[%s258 + $0x20] sm:$0xff]
    %v264 = vld [vmem:[%s258 + $0x28] sm:$0xff]
    %v265 = vld [vmem:[%s258 + $0x30] sm:$0xff]
    %v266 = vld [vmem:[%s258 + $0x38] sm:$0xff]
    %v267 = vld [vmem:[%s258 + $0x40] sm:$0xff]
    %v268 = vld [vmem:[%s258 + $0x48] sm:$0xff]
    %v269 = vld [vmem:[%s258 + $0x50] sm:$0xff]
    %v270 = vld [vmem:[%s258 + $0x58] sm:$0xff]
    %v271 = vld [vmem:[%s258 + $0x60] sm:$0xff]
    %v272 = vld [vmem:[%s258 + $0x68] sm:$0xff]
    %v273 = vld [vmem:[%s258 + $0x70] sm:$0xff]
    %v274 = vld [vmem:[%s258 + $0x78] sm:$0xff]
    %v275 = vld [vmem:[#allocation7 + $0x2] sm:$0x1]
    %v276 = vlaneseq
    %v277 = vshrl.u32 %v276, 7
    %v278 = vsub.s32 0, %v277
    %v279 = vrot.slane %v275, %v278
    %280 = vmatprep.subr.mxu0 0.0
    %281 = vmatpush1.msra.mxu0 %v274
    %282 = vmatprep.subr.mxu0 0.0
    %283 = vmatpush1.msra.mxu0 %v273
    %284 = vmatprep.subr.mxu0 0.0
    %285 = vmatpush1.msra.mxu0 %v272
    %286 = vmatprep.subr.mxu0 0.0
    %287 = vmatpush1.msra.mxu0 %v271
    %288 = vmatprep.subr.mxu0 0.0
    %289 = vmatpush1.msra.mxu0 %v270
    %290 = vmatprep.subr.mxu0 0.0
    %291 = vmatpush1.msra.mxu0 %v269
    %292 = vmatprep.subr.mxu0 0.0
    %293 = vmatpush1.msra.mxu0 %v268
    %294 = vmatprep.subr.mxu0 0.0
    %295 = vmatpush1.msra.mxu0 %v267
    %296 = vmatprep.subr.mxu0 0.0
    %297 = vmatpush1.msra.mxu0 %v266
    %298 = vmatprep.subr.mxu0 0.0
    %299 = vmatpush1.msra.mxu0 %v265
    %300 = vmatprep.subr.mxu0 0.0
    %301 = vmatpush1.msra.mxu0 %v264
    %302 = vmatprep.subr.mxu0 0.0
    %303 = vmatpush1.msra.mxu0 %v263
    %304 = vmatprep.subr.mxu0 0.0
    %305 = vmatpush1.msra.mxu0 %v262
    %306 = vmatprep.subr.mxu0 0.0
    %307 = vmatpush1.msra.mxu0 %v261
    %308 = vmatprep.subr.mxu0 0.0
    %309 = vmatpush1.msra.mxu0 %v260
    %310 = vmatprep.subr.mxu0 0.0
    %311 = vmatpush1.msra.mxu0 %v259
    %312 = vmatprep.subr.mxu0 0.0
    %313 = vmatpush2.msra.mxu0 0.0
    %314 = vmatprep.subr.mxu0 0.0
    %315 = vmatpush2.msra.mxu0 0.0
    %316 = vmatprep.subr.mxu0 0.0
    %317 = vmatpush2.msra.mxu0 0.0
    %318 = vmatprep.subr.mxu0 0.0
    %319 = vmatpush2.msra.mxu0 0.0
    %320 = vmatprep.subr.mxu0 0.0
    %321 = vmatpush2.msra.mxu0 0.0
    %322 = vmatprep.subr.mxu0 0.0
    %323 = vmatpush2.msra.mxu0 0.0
    %324 = vmatprep.subr.mxu0 0.0
    %325 = vmatpush2.msra.mxu0 0.0
    %326 = vmatprep.subr.mxu0 0.0
    %327 = vmatpush2.msra.mxu0 0.0
    %328 = vmatprep.subr.mxu0 0.0
    %329 = vmatpush2.msra.mxu0 0.0
    %330 = vmatprep.subr.mxu0 0.0
    %331 = vmatpush2.msra.mxu0 0.0
    %332 = vmatprep.subr.mxu0 0.0
    %333 = vmatpush2.msra.mxu0 0.0
    %334 = vmatprep.subr.mxu0 0.0
    %335 = vmatpush2.msra.mxu0 0.0
    %336 = vmatprep.subr.mxu0 0.0
    %337 = vmatpush2.msra.mxu0 0.0
    %338 = vmatprep.subr.mxu0 0.0
    %339 = vmatpush2.msra.mxu0 0.0
    %340 = vmatprep.subr.mxu0 0.0
    %341 = vmatpush2.msra.mxu0 0.0
    %342 = vmatprep.subr.mxu0 0.0
    %343 = vmatpush2.msra.mxu0 0.0
    %344 = vmatprep.mubr.f32.mxu0 0.0
    %345 = vmatmul.mubr.f32.gmra.mxu0 %v257
    %v346 = vpop.f32.mrf.mxu0
    %v347 = vadd.f32 %v279, %v346
    %v348 = vpop.f32.mrf.mxu0
    %349 = vdwg.mxu0
    %v350 = vmax.f32 %v347, 0.0
    %351 = vadd.xlane.f32.xlu0 %v350
    %v352 = vpop.xlane.xlu0 %351
    %v353 = vmul.f32 %v352, 0.0078125
    %v354 = vmul.f32 %v350, %v353
    %355 = vmatprep.subr.mxu0 0.0
    %356 = vmatpush1.msra.mxu0 %v88
    %357 = vmatprep.subr.mxu0 0.0
    %358 = vmatpush1.msra.mxu0 %v87
    %359 = vmatprep.subr.mxu0 0.0
    %360 = vmatpush1.msra.mxu0 %v86
    %361 = vmatprep.subr.mxu0 0.0
    %362 = vmatpush1.msra.mxu0 %v85
    %363 = vmatprep.subr.mxu0 0.0
    %364 = vmatpush1.msra.mxu0 %v84
    %365 = vmatprep.subr.mxu0 0.0
    %366 = vmatpush1.msra.mxu0 %v83
    %367 = vmatprep.subr.mxu0 0.0
    %368 = vmatpush1.msra.mxu0 %v82
    %369 = vmatprep.subr.mxu0 0.0
    %370 = vmatpush1.msra.mxu0 %v81
    %371 = vmatprep.subr.mxu0 0.0
    %372 = vmatpush1.msra.mxu0 %v80
    %373 = vmatprep.subr.mxu0 0.0
    %374 = vmatpush1.msra.mxu0 %v79
    %375 = vmatprep.subr.mxu0 0.0
    %376 = vmatpush1.msra.mxu0 %v78
    %377 = vmatprep.subr.mxu0 0.0
    %378 = vmatpush1.msra.mxu0 %v77
    %379 = vmatprep.subr.mxu0 0.0
    %380 = vmatpush1.msra.mxu0 %v76
    %381 = vmatprep.subr.mxu0 0.0
    %382 = vmatpush1.msra.mxu0 %v75
    %383 = vmatprep.subr.mxu0 0.0
    %384 = vmatpush1.msra.mxu0 %v74
    %385 = vmatprep.subr.mxu0 0.0
    %386 = vmatpush1.msra.mxu0 %v73
    %387 = vmatprep.subr.mxu0 0.0
    %388 = vmatpush2.msra.mxu0 0.0
    %389 = vmatprep.subr.mxu0 0.0
    %390 = vmatpush2.msra.mxu0 0.0
    %391 = vmatprep.subr.mxu0 0.0
    %392 = vmatpush2.msra.mxu0 0.0
    %393 = vmatprep.subr.mxu0 0.0
    %394 = vmatpush2.msra.mxu0 0.0
    %395 = vmatprep.subr.mxu0 0.0
    %396 = vmatpush2.msra.mxu0 0.0
    %397 = vmatprep.subr.mxu0 0.0
    %398 = vmatpush2.msra.mxu0 0.0
    %399 = vmatprep.subr.mxu0 0.0
    %400 = vmatpush2.msra.mxu0 0.0
    %401 = vmatprep.subr.mxu0 0.0
    %402 = vmatpush2.msra.mxu0 0.0
    %403 = vmatprep.subr.mxu0 0.0
    %404 = vmatpush2.msra.mxu0 0.0
    %405 = vmatprep.subr.mxu0 0.0
    %406 = vmatpush2.msra.mxu0 0.0
    %407 = vmatprep.subr.mxu0 0.0
    %408 = vmatpush2.msra.mxu0 0.0
    %409 = vmatprep.subr.mxu0 0.0
    %410 = vmatpush2.msra.mxu0 0.0
    %411 = vmatprep.subr.mxu0 0.0
    %412 = vmatpush2.msra.mxu0 0.0
    %413 = vmatprep.subr.mxu0 0.0
    %414 = vmatpush2.msra.mxu0 0.0
    %415 = vmatprep.subr.mxu0 0.0
    %416 = vmatpush2.msra.mxu0 0.0
    %417 = vmatprep.subr.mxu0 0.0
    %418 = vmatpush2.msra.mxu0 0.0
    %419 = vmatprep.mubr.f32.mxu0 0.0
    %420 = vmatmul.mubr.f32.gmra.mxu0 %v354
    %v421 = vpop.f32.mrf.mxu0
    %v422 = vadd.f32 %v93, %v421
    %v423 = vpop.f32.mrf.mxu0
    %424 = vdwg.mxu0
    %v425 = vmax.f32 %v422, 0.0
    %426 = vmatprep.subr.mxu0 0.0
    %427 = vmatpush1.msra.mxu0 %v181
    %428 = vmatprep.subr.mxu0 0.0
    %429 = vmatpush1.msra.mxu0 %v180
    %430 = vmatprep.subr.mxu0 0.0
    %431 = vmatpush1.msra.mxu0 %v179
    %432 = vmatprep.subr.mxu0 0.0
    %433 = vmatpush1.msra.mxu0 %v178
    %434 = vmatprep.subr.mxu0 0.0
    %435 = vmatpush1.msra.mxu0 %v177
    %436 = vmatprep.subr.mxu0 0.0
    %437 = vmatpush1.msra.mxu0 %v176
    %438 = vmatprep.subr.mxu0 0.0
    %439 = vmatpush1.msra.mxu0 %v175
    %440 = vmatprep.subr.mxu0 0.0
    %441 = vmatpush1.msra.mxu0 %v174
    %442 = vmatprep.subr.mxu0 0.0
    %443 = vmatpush1.msra.mxu0 %v173
    %444 = vmatprep.subr.mxu0 0.0
    %445 = vmatpush1.msra.mxu0 %v172
    %446 = vmatprep.subr.mxu0 0.0
    %447 = vmatpush1.msra.mxu0 %v171
    %448 = vmatprep.subr.mxu0 0.0
    %449 = vmatpush1.msra.mxu0 %v170
    %450 = vmatprep.subr.mxu0 0.0
    %451 = vmatpush1.msra.mxu0 %v169
    %452 = vmatprep.subr.mxu0 0.0
    %453 = vmatpush1.msra.mxu0 %v168
    %454 = vmatprep.subr.mxu0 0.0
    %455 = vmatpush1.msra.mxu0 %v167
    %456 = vmatprep.subr.mxu0 0.0
    %457 = vmatpush1.msra.mxu0 %v166
    %458 = vmatprep.subr.mxu0 0.0
    %459 = vmatpush2.msra.mxu0 0.0
    %460 = vmatprep.subr.mxu0 0.0
    %461 = vmatpush2.msra.mxu0 0.0
    %462 = vmatprep.subr.mxu0 0.0
    %463 = vmatpush2.msra.mxu0 0.0
    %464 = vmatprep.subr.mxu0 0.0
    %465 = vmatpush2.msra.mxu0 0.0
    %466 = vmatprep.subr.mxu0 0.0
    %467 = vmatpush2.msra.mxu0 0.0
    %468 = vmatprep.subr.mxu0 0.0
    %469 = vmatpush2.msra.mxu0 0.0
    %470 = vmatprep.subr.mxu0 0.0
    %471 = vmatpush2.msra.mxu0 0.0
    %472 = vmatprep.subr.mxu0 0.0
    %473 = vmatpush2.msra.mxu0 0.0
    %474 = vmatprep.subr.mxu0 0.0
    %475 = vmatpush2.msra.mxu0 0.0
    %476 = vmatprep.subr.mxu0 0.0
    %477 = vmatpush2.msra.mxu0 0.0
    %478 = vmatprep.subr.mxu0 0.0
    %479 = vmatpush2.msra.mxu0 0.0
    %480 = vmatprep.subr.mxu0 0.0
    %481 = vmatpush2.msra.mxu0 0.0
    %482 = vmatprep.subr.mxu0 0.0
    %483 = vmatpush2.msra.mxu0 0.0
    %484 = vmatprep.subr.mxu0 0.0
    %485 = vmatpush2.msra.mxu0 0.0
    %486 = vmatprep.subr.mxu0 0.0
    %487 = vmatpush2.msra.mxu0 0.0
    %488 = vmatprep.subr.mxu0 0.0
    %489 = vmatpush2.msra.mxu0 0.0
    %490 = vmatprep.mubr.f32.mxu0 0.0
    %491 = vmatmul.mubr.f32.gmra.mxu0 %v425
    %v492 = vpop.f32.mrf.mxu0
    %v493 = vadd.f32 %v186, %v492
    %v494 = vpop.f32.mrf.mxu0
    %495 = vdwg.mxu0
    %v496 = vmax.f32 %v493, 0.0
    %497 = vmatprep.subr.mxu0 0.0
    %498 = vmatpush1.msra.mxu0 %v274
    %499 = vmatprep.subr.mxu0 0.0
    %500 = vmatpush1.msra.mxu0 %v273
    %501 = vmatprep.subr.mxu0 0.0
    %502 = vmatpush1.msra.mxu0 %v272
    %503 = vmatprep.subr.mxu0 0.0
    %504 = vmatpush1.msra.mxu0 %v271
    %505 = vmatprep.subr.mxu0 0.0
    %506 = vmatpush1.msra.mxu0 %v270
    %507 = vmatprep.subr.mxu0 0.0
    %508 = vmatpush1.msra.mxu0 %v269
    %509 = vmatprep.subr.mxu0 0.0
    %510 = vmatpush1.msra.mxu0 %v268
    %511 = vmatprep.subr.mxu0 0.0
    %512 = vmatpush1.msra.mxu0 %v267
    %513 = vmatprep.subr.mxu0 0.0
    %514 = vmatpush1.msra.mxu0 %v266
    %515 = vmatprep.subr.mxu0 0.0
    %516 = vmatpush1.msra.mxu0 %v265
    %517 = vmatprep.subr.mxu0 0.0
    %518 = vmatpush1.msra.mxu0 %v264
    %519 = vmatprep.subr.mxu0 0.0
    %520 = vmatpush1.msra.mxu0 %v263
    %521 = vmatprep.subr.mxu0 0.0
    %522 = vmatpush1.msra.mxu0 %v262
    %523 = vmatprep.subr.mxu0 0.0
    %524 = vmatpush1.msra.mxu0 %v261
    %525 = vmatprep.subr.mxu0 0.0
    %526 = vmatpush1.msra.mxu0 %v260
    %527 = vmatprep.subr.mxu0 0.0
    %528 = vmatpush1.msra.mxu0 %v259
    %529 = vmatprep.subr.mxu0 0.0
    %530 = vmatpush2.msra.mxu0 0.0
    %531 = vmatprep.subr.mxu0 0.0
    %532 = vmatpush2.msra.mxu0 0.0
    %533 = vmatprep.subr.mxu0 0.0
    %534 = vmatpush2.msra.mxu0 0.0
    %535 = vmatprep.subr.mxu0 0.0
    %536 = vmatpush2.msra.mxu0 0.0
    %537 = vmatprep.subr.mxu0 0.0
    %538 = vmatpush2.msra.mxu0 0.0
    %539 = vmatprep.subr.mxu0 0.0
    %540 = vmatpush2.msra.mxu0 0.0
    %541 = vmatprep.subr.mxu0 0.0
    %542 = vmatpush2.msra.mxu0 0.0
    %543 = vmatprep.subr.mxu0 0.0
    %544 = vmatpush2.msra.mxu0 0.0
    %545 = vmatprep.subr.mxu0 0.0
    %546 = vmatpush2.msra.mxu0 0.0
    %547 = vmatprep.subr.mxu0 0.0
    %548 = vmatpush2.msra.mxu0 0.0
    %549 = vmatprep.subr.mxu0 0.0
    %550 = vmatpush2.msra.mxu0 0.0
    %551 = vmatprep.subr.mxu0 0.0
    %552 = vmatpush2.msra.mxu0 0.0
    %553 = vmatprep.subr.mxu0 0.0
    %554 = vmatpush2.msra.mxu0 0.0
    %555 = vmatprep.subr.mxu0 0.0
    %556 = vmatpush2.msra.mxu0 0.0
    %557 = vmatprep.subr.mxu0 0.0
    %558 = vmatpush2.msra.mxu0 0.0
    %559 = vmatprep.subr.mxu0 0.0
    %560 = vmatpush2.msra.mxu0 0.0
    %561 = vmatprep.mubr.f32.mxu0 0.0
    %562 = vmatmul.mubr.f32.gmra.mxu0 %v496
    %v563 = vpop.f32.mrf.mxu0
    %v564 = vadd.f32 %v279, %v563
    %v565 = vpop.f32.mrf.mxu0
    %566 = vdwg.mxu0
    %v567 = vmax.f32 %v564, 0.0
    %568 = vadd.xlane.f32.xlu0 %v567
    %v569 = vpop.xlane.xlu0 %568
    %v570 = vmul.f32 %v569, 0.0078125
    %v571 = vmul.f32 %v567, %v570
    %572 = vmatprep.subr.mxu0 0.0
    %573 = vmatpush1.msra.mxu0 %v88
    %574 = vmatprep.subr.mxu0 0.0
    %575 = vmatpush1.msra.mxu0 %v87
    %576 = vmatprep.subr.mxu0 0.0
    %577 = vmatpush1.msra.mxu0 %v86
    %578 = vmatprep.subr.mxu0 0.0
    %579 = vmatpush1.msra.mxu0 %v85
    %580 = vmatprep.subr.mxu0 0.0
    %581 = vmatpush1.msra.mxu0 %v84
    %582 = vmatprep.subr.mxu0 0.0
    %583 = vmatpush1.msra.mxu0 %v83
    %584 = vmatprep.subr.mxu0 0.0
    %585 = vmatpush1.msra.mxu0 %v82
    %586 = vmatprep.subr.mxu0 0.0
    %587 = vmatpush1.msra.mxu0 %v81
    %588 = vmatprep.subr.mxu0 0.0
    %589 = vmatpush1.msra.mxu0 %v80
    %590 = vmatprep.subr.mxu0 0.0
    %591 = vmatpush1.msra.mxu0 %v79
    %592 = vmatprep.subr.mxu0 0.0
    %593 = vmatpush1.msra.mxu0 %v78
    %594 = vmatprep.subr.mxu0 0.0
    %595 = vmatpush1.msra.mxu0 %v77
    %596 = vmatprep.subr.mxu0 0.0
    %597 = vmatpush1.msra.mxu0 %v76
    %598 = vmatprep.subr.mxu0 0.0
    %599 = vmatpush1.msra.mxu0 %v75
    %600 = vmatprep.subr.mxu0 0.0
    %601 = vmatpush1.msra.mxu0 %v74
    %602 = vmatprep.subr.mxu0 0.0
    %603 = vmatpush1.msra.mxu0 %v73
    %604 = vmatprep.subr.mxu0 0.0
    %605 = vmatpush2.msra.mxu0 0.0
    %606 = vmatprep.subr.mxu0 0.0
    %607 = vmatpush2.msra.mxu0 0.0
    %608 = vmatprep.subr.mxu0 0.0
    %609 = vmatpush2.msra.mxu0 0.0
    %610 = vmatprep.subr.mxu0 0.0
    %611 = vmatpush2.msra.mxu0 0.0
    %612 = vmatprep.subr.mxu0 0.0
    %613 = vmatpush2.msra.mxu0 0.0
    %614 = vmatprep.subr.mxu0 0.0
    %615 = vmatpush2.msra.mxu0 0.0
    %616 = vmatprep.subr.mxu0 0.0
    %617 = vmatpush2.msra.mxu0 0.0
    %618 = vmatprep.subr.mxu0 0.0
    %619 = vmatpush2.msra.mxu0 0.0
    %620 = vmatprep.subr.mxu0 0.0
    %621 = vmatpush2.msra.mxu0 0.0
    %622 = vmatprep.subr.mxu0 0.0
    %623 = vmatpush2.msra.mxu0 0.0
    %624 = vmatprep.subr.mxu0 0.0
    %625 = vmatpush2.msra.mxu0 0.0
    %626 = vmatprep.subr.mxu0 0.0
    %627 = vmatpush2.msra.mxu0 0.0
    %628 = vmatprep.subr.mxu0 0.0
    %629 = vmatpush2.msra.mxu0 0.0
    %630 = vmatprep.subr.mxu0 0.0
    %631 = vmatpush2.msra.mxu0 0.0
    %632 = vmatprep.subr.mxu0 0.0
    %633 = vmatpush2.msra.mxu0 0.0
    %634 = vmatprep.subr.mxu0 0.0
    %635 = vmatpush2.msra.mxu0 0.0
    %636 = vmatprep.mubr.f32.mxu0 0.0
    %637 = vmatmul.mubr.f32.gmra.mxu0 %v571
    %v638 = vpop.f32.mrf.mxu0
    %v639 = vadd.f32 %v93, %v638
    %v640 = vpop.f32.mrf.mxu0
    %641 = vdwg.mxu0
    %v642 = vmax.f32 %v639, 0.0
    %643 = vmatprep.subr.mxu0 0.0
    %644 = vmatpush1.msra.mxu0 %v181
    %645 = vmatprep.subr.mxu0 0.0
    %646 = vmatpush1.msra.mxu0 %v180
    %647 = vmatprep.subr.mxu0 0.0
    %648 = vmatpush1.msra.mxu0 %v179
    %649 = vmatprep.subr.mxu0 0.0
    %650 = vmatpush1.msra.mxu0 %v178
    %651 = vmatprep.subr.mxu0 0.0
    %652 = vmatpush1.msra.mxu0 %v177
    %653 = vmatprep.subr.mxu0 0.0
    %654 = vmatpush1.msra.mxu0 %v176
    %655 = vmatprep.subr.mxu0 0.0
    %656 = vmatpush1.msra.mxu0 %v175
    %657 = vmatprep.subr.mxu0 0.0
    %658 = vmatpush1.msra.mxu0 %v174
    %659 = vmatprep.subr.mxu0 0.0
    %660 = vmatpush1.msra.mxu0 %v173
    %661 = vmatprep.subr.mxu0 0.0
    %662 = vmatpush1.msra.mxu0 %v172
    %663 = vmatprep.subr.mxu0 0.0
    %664 = vmatpush1.msra.mxu0 %v171
    %665 = vmatprep.subr.mxu0 0.0
    %666 = vmatpush1.msra.mxu0 %v170
    %667 = vmatprep.subr.mxu0 0.0
    %668 = vmatpush1.msra.mxu0 %v169
    %669 = vmatprep.subr.mxu0 0.0
    %670 = vmatpush1.msra.mxu0 %v168
    %671 = vmatprep.subr.mxu0 0.0
    %672 = vmatpush1.msra.mxu0 %v167
    %673 = vmatprep.subr.mxu0 0.0
    %674 = vmatpush1.msra.mxu0 %v166
    %675 = vmatprep.subr.mxu0 0.0
    %676 = vmatpush2.msra.mxu0 0.0
    %677 = vmatprep.subr.mxu0 0.0
    %678 = vmatpush2.msra.mxu0 0.0
    %679 = vmatprep.subr.mxu0 0.0
    %680 = vmatpush2.msra.mxu0 0.0
    %681 = vmatprep.subr.mxu0 0.0
    %682 = vmatpush2.msra.mxu0 0.0
    %683 = vmatprep.subr.mxu0 0.0
    %684 = vmatpush2.msra.mxu0 0.0
    %685 = vmatprep.subr.mxu0 0.0
    %686 = vmatpush2.msra.mxu0 0.0
    %687 = vmatprep.subr.mxu0 0.0
    %688 = vmatpush2.msra.mxu0 0.0
    %689 = vmatprep.subr.mxu0 0.0
    %690 = vmatpush2.msra.mxu0 0.0
    %691 = vmatprep.subr.mxu0 0.0
    %692 = vmatpush2.msra.mxu0 0.0
    %693 = vmatprep.subr.mxu0 0.0
    %694 = vmatpush2.msra.mxu0 0.0
    %695 = vmatprep.subr.mxu0 0.0
    %696 = vmatpush2.msra.mxu0 0.0
    %697 = vmatprep.subr.mxu0 0.0
    %698 = vmatpush2.msra.mxu0 0.0
    %699 = vmatprep.subr.mxu0 0.0
    %700 = vmatpush2.msra.mxu0 0.0
    %701 = vmatprep.subr.mxu0 0.0
    %702 = vmatpush2.msra.mxu0 0.0
    %703 = vmatprep.subr.mxu0 0.0
    %704 = vmatpush2.msra.mxu0 0.0
    %705 = vmatprep.subr.mxu0 0.0
    %706 = vmatpush2.msra.mxu0 0.0
    %707 = vmatprep.mubr.f32.mxu0 0.0
    %708 = vmatmul.mubr.f32.gmra.mxu0 %v642
    %v709 = vpop.f32.mrf.mxu0
    %v710 = vadd.f32 %v186, %v709
    %v711 = vpop.f32.mrf.mxu0
    %712 = vdwg.mxu0
    %v713 = vmax.f32 %v710, 0.0
    %714 = vmatprep.subr.mxu0 0.0
    %715 = vmatpush1.msra.mxu0 %v274
    %716 = vmatprep.subr.mxu0 0.0
    %717 = vmatpush1.msra.mxu0 %v273
    %718 = vmatprep.subr.mxu0 0.0
    %719 = vmatpush1.msra.mxu0 %v272
    %720 = vmatprep.subr.mxu0 0.0
    %721 = vmatpush1.msra.mxu0 %v271
    %722 = vmatprep.subr.mxu0 0.0
    %723 = vmatpush1.msra.mxu0 %v270
    %724 = vmatprep.subr.mxu0 0.0
    %725 = vmatpush1.msra.mxu0 %v269
    %726 = vmatprep.subr.mxu0 0.0
    %727 = vmatpush1.msra.mxu0 %v268
    %728 = vmatprep.subr.mxu0 0.0
    %729 = vmatpush1.msra.mxu0 %v267
    %730 = vmatprep.subr.mxu0 0.0
    %731 = vmatpush1.msra.mxu0 %v266
    %732 = vmatprep.subr.mxu0 0.0
    %733 = vmatpush1.msra.mxu0 %v265
    %734 = vmatprep.subr.mxu0 0.0
    %735 = vmatpush1.msra.mxu0 %v264
    %736 = vmatprep.subr.mxu0 0.0
    %737 = vmatpush1.msra.mxu0 %v263
    %738 = vmatprep.subr.mxu0 0.0
    %739 = vmatpush1.msra.mxu0 %v262
    %740 = vmatprep.subr.mxu0 0.0
    %741 = vmatpush1.msra.mxu0 %v261
    %742 = vmatprep.subr.mxu0 0.0
    %743 = vmatpush1.msra.mxu0 %v260
    %744 = vmatprep.subr.mxu0 0.0
    %745 = vmatpush1.msra.mxu0 %v259
    %746 = vmatprep.subr.mxu0 0.0
    %747 = vmatpush2.msra.mxu0 0.0
    %748 = vmatprep.subr.mxu0 0.0
    %749 = vmatpush2.msra.mxu0 0.0
    %750 = vmatprep.subr.mxu0 0.0
    %751 = vmatpush2.msra.mxu0 0.0
    %752 = vmatprep.subr.mxu0 0.0
    %753 = vmatpush2.msra.mxu0 0.0
    %754 = vmatprep.subr.mxu0 0.0
    %755 = vmatpush2.msra.mxu0 0.0
    %756 = vmatprep.subr.mxu0 0.0
    %757 = vmatpush2.msra.mxu0 0.0
    %758 = vmatprep.subr.mxu0 0.0
    %759 = vmatpush2.msra.mxu0 0.0
    %760 = vmatprep.subr.mxu0 0.0
    %761 = vmatpush2.msra.mxu0 0.0
    %762 = vmatprep.subr.mxu0 0.0
    %763 = vmatpush2.msra.mxu0 0.0
    %764 = vmatprep.subr.mxu0 0.0
    %765 = vmatpush2.msra.mxu0 0.0
    %766 = vmatprep.subr.mxu0 0.0
    %767 = vmatpush2.msra.mxu0 0.0
    %768 = vmatprep.subr.mxu0 0.0
    %769 = vmatpush2.msra.mxu0 0.0
    %770 = vmatprep.subr.mxu0 0.0
    %771 = vmatpush2.msra.mxu0 0.0
    %772 = vmatprep.subr.mxu0 0.0
    %773 = vmatpush2.msra.mxu0 0.0
    %774 = vmatprep.subr.mxu0 0.0
    %775 = vmatpush2.msra.mxu0 0.0
    %776 = vmatprep.subr.mxu0 0.0
    %777 = vmatpush2.msra.mxu0 0.0
    %778 = vmatprep.mubr.f32.mxu0 0.0
    %779 = vmatmul.mubr.f32.gmra.mxu0 %v713
    %v780 = vpop.f32.mrf.mxu0
    %v781 = vadd.f32 %v279, %v780
    %v782 = vpop.f32.mrf.mxu0
    %783 = vdwg.mxu0
    %v784 = vmax.f32 %v781, 0.0
    %785 = vadd.xlane.f32.xlu0 %v784
    %v786 = vpop.xlane.xlu0 %785
    %v787 = vmul.f32 %v786, 0.0078125
    %v788 = vmul.f32 %v784, %v787
    %v789 = vld [vmem:[#allocation8] sm:$0xff]
    %v790 = vld [vmem:[#allocation8 + $0x8] sm:$0xff]
    %v791 = vld [vmem:[#allocation8 + $0x10] sm:$0xff]
    %v792 = vld [vmem:[#allocation8 + $0x18] sm:$0xff]
    %v793 = vld [vmem:[#allocation8 + $0x20] sm:$0xff]
    %v794 = vld [vmem:[#allocation8 + $0x28] sm:$0xff]
    %v795 = vld [vmem:[#allocation8 + $0x30] sm:$0xff]
    %v796 = vld [vmem:[#allocation8 + $0x38] sm:$0xff]
    %v797 = vld [vmem:[#allocation8 + $0x40] sm:$0xff]
    %v798 = vld [vmem:[#allocation8 + $0x48] sm:$0xff]
    %v799 = vld [vmem:[#allocation8 + $0x50] sm:$0xff]
    %v800 = vld [vmem:[#allocation8 + $0x58] sm:$0xff]
    %v801 = vld [vmem:[#allocation8 + $0x60] sm:$0xff]
    %v802 = vld [vmem:[#allocation8 + $0x68] sm:$0xff]
    %v803 = vld [vmem:[#allocation8 + $0x70] sm:$0xff]
    %v804 = vld [vmem:[#allocation8 + $0x78] sm:$0xff]
    %v805 = vld [vmem:[%s4] sm:$0x1]
    %v807 = vlaneseq
    %v808 = vshrl.u32 %v807, 7
    %v809 = vsub.s32 0, %v808
    %v810 = vrot.slane %v805, %v809
    %812 = vmatprep.subr.mxu0 0.0
    %813 = vmatpush1.msra.mxu0 %v804
    %814 = vmatprep.subr.mxu0 0.0
    %815 = vmatpush1.msra.mxu0 %v803
    %816 = vmatprep.subr.mxu0 0.0
    %817 = vmatpush1.msra.mxu0 %v802
    %818 = vmatprep.subr.mxu0 0.0
    %819 = vmatpush1.msra.mxu0 %v801
    %820 = vmatprep.subr.mxu0 0.0
    %821 = vmatpush1.msra.mxu0 %v800
    %822 = vmatprep.subr.mxu0 0.0
    %823 = vmatpush1.msra.mxu0 %v799
    %824 = vmatprep.subr.mxu0 0.0
    %825 = vmatpush1.msra.mxu0 %v798
    %826 = vmatprep.subr.mxu0 0.0
    %827 = vmatpush1.msra.mxu0 %v797
    %828 = vmatprep.subr.mxu0 0.0
    %829 = vmatpush1.msra.mxu0 %v796
    %830 = vmatprep.subr.mxu0 0.0
    %831 = vmatpush1.msra.mxu0 %v795
    %832 = vmatprep.subr.mxu0 0.0
    %833 = vmatpush1.msra.mxu0 %v794
    %834 = vmatprep.subr.mxu0 0.0
    %835 = vmatpush1.msra.mxu0 %v793
    %836 = vmatprep.subr.mxu0 0.0
    %837 = vmatpush1.msra.mxu0 %v792
    %838 = vmatprep.subr.mxu0 0.0
    %839 = vmatpush1.msra.mxu0 %v791
    %840 = vmatprep.subr.mxu0 0.0
    %841 = vmatpush1.msra.mxu0 %v790
    %842 = vmatprep.subr.mxu0 0.0
    %843 = vmatpush1.msra.mxu0 %v789
    %844 = vmatprep.subr.mxu0 0.0
    %845 = vmatpush2.msra.mxu0 0.0
    %846 = vmatprep.subr.mxu0 0.0
    %847 = vmatpush2.msra.mxu0 0.0
    %848 = vmatprep.subr.mxu0 0.0
    %849 = vmatpush2.msra.mxu0 0.0
    %850 = vmatprep.subr.mxu0 0.0
    %851 = vmatpush2.msra.mxu0 0.0
    %852 = vmatprep.subr.mxu0 0.0
    %853 = vmatpush2.msra.mxu0 0.0
    %854 = vmatprep.subr.mxu0 0.0
    %855 = vmatpush2.msra.mxu0 0.0
    %856 = vmatprep.subr.mxu0 0.0
    %857 = vmatpush2.msra.mxu0 0.0
    %858 = vmatprep.subr.mxu0 0.0
    %859 = vmatpush2.msra.mxu0 0.0
    %860 = vmatprep.subr.mxu0 0.0
    %861 = vmatpush2.msra.mxu0 0.0
    %862 = vmatprep.subr.mxu0 0.0
    %863 = vmatpush2.msra.mxu0 0.0
    %864 = vmatprep.subr.mxu0 0.0
    %865 = vmatpush2.msra.mxu0 0.0
    %866 = vmatprep.subr.mxu0 0.0
    %867 = vmatpush2.msra.mxu0 0.0
    %868 = vmatprep.subr.mxu0 0.0
    %869 = vmatpush2.msra.mxu0 0.0
    %870 = vmatprep.subr.mxu0 0.0
    %871 = vmatpush2.msra.mxu0 0.0
    %872 = vmatprep.subr.mxu0 0.0
    %873 = vmatpush2.msra.mxu0 0.0
    %874 = vmatprep.subr.mxu0 0.0
    %875 = vmatpush2.msra.mxu0 0.0
    %876 = vmatprep.mubr.f32.mxu0 0.0
    %877 = vmatmul.mubr.f32.gmra.mxu0 %v788
    %v878 = vpop.f32.mrf.mxu0
    %v879 = vadd.f32 %v810, %v878
    %v880 = vpop.f32.mrf.mxu0
    %881 = vdwg.mxu0
    %882 = vst [vmem:[#allocation10] sm:$0xff] %v879
    // Predicated region
    $region38: #{tpu_custom_call.1} parent=1 // pred_check
      _
    $region39: #{tpu_custom_call.1} parent=1 // pred_check_branch
      %884 = sbr.rel (0) target = $region41
    $region40: #{tpu_custom_call.1} parent=1 // pred_region
      %s886 = ssub.s32 128, 128
      %887 = vsyncadd [#allocation4], %s886
      %s889 = sshll.u32 [#allocation10], 4
      %s890 = int_to_ptr.vmem [resolvable:$true] %s889
      %892 = dma.vmem_to_hbm [thread:$0]  %s890, 128, %s5, [#allocation4]
    $region41: #{tpu_custom_call.1} parent=1 // pred_fallthru
      _
    // Predicated region
    $region42: #{tpu_custom_call.1} parent=1 // pred_check
      _
    $region43: #{tpu_custom_call.1} parent=1 // pred_check_branch
      %894 = sbr.rel (0) target = $region45
    $region44: #{tpu_custom_call.1} parent=1 // pred_region
      %895 = dma.done [#allocation4], 128
    $region45: #{tpu_custom_call.1} parent=1 // pred_fallthru
      _
    %896 = vsyncpa [#allocation3], 1
    %897 = vsyncpa [#allocation6], 1
    %898 = vsyncpa [#allocation9], 1
    %899 = vsyncpa [#allocation4], 1

</llo_original>
